<compile_context>
chip_gen: v7x
topology: tpu7x:2x2x1
jax: 0.10.0
libtpu: 0.0.40
codegen_flags: <defaults>
</compile_context>

<pallas_src>
import jax
import jax.numpy as jnp
from jax.experimental import pallas as pl
from jax.experimental.pallas import tpu as pltpu

_EPS = 1e-5


def bn_add_relu_kernel(x_ref, y_ref, gamma_ref, beta_ref, o_ref):
    # x_ref / y_ref / o_ref: (M, C) with M = N*H*W; gamma_ref / beta_ref: (1, C)
    inv_m = 1.0 / float(x_ref.shape[0])

    # Pass 1: per-channel mean over the (small) sublane axis.
    mean = jnp.sum(x_ref[...].astype(jnp.float32), axis=0,
                   keepdims=True) * inv_m                       # (1, C)

    # Pass 2: two-pass (centered) biased variance — matches PyTorch's
    # training-mode normalization and avoids E[x^2]-mean^2 cancellation.
    xc = x_ref[...].astype(jnp.float32) - mean
    var = jnp.sum(xc * xc, axis=0, keepdims=True) * inv_m       # (1, C)
    inv_std = jax.lax.rsqrt(var + _EPS)

    # Fold BN into one per-channel scale/bias.
    scale = gamma_ref[...] * inv_std                            # (1, C)
    bias = beta_ref[...] - mean * scale                         # (1, C)

    # Pass 3: apply folded BN + residual add + ReLU.  x/y are re-read from
    # VMEM here (3 vld/cycle, ~free) so stats-phase values don't stay live.
    out = (x_ref[...].astype(jnp.float32) * scale + bias
           + y_ref[...].astype(jnp.float32))
    o_ref[...] = jnp.maximum(out, 0.0).astype(o_ref.dtype)


def batchnorm_add_relu(x_nchw, y_nchw, gamma, beta):
    """x_nchw, y_nchw: (N, C, H, W); gamma, beta: (C,). Returns (N, C, H, W)."""
    N, C, H, W = x_nchw.shape
    HW = H * W
    M = N * HW

    # Lane-dense layout: channels on lanes, N*H*W on sublanes.  The wrapper
    # transposes are ~150 KiB each — negligible next to the vreg/store wins.
    x2d = x_nchw.reshape(N, C, HW).transpose(0, 2, 1).reshape(M, C)
    y2d = y_nchw.reshape(N, C, HW).transpose(0, 2, 1).reshape(M, C)
    g2d = gamma.reshape(1, C).astype(jnp.float32)
    b2d = beta.reshape(1, C).astype(jnp.float32)

    # Single monolithic block / single grid step: total footprint is <1 MiB,
    # well inside scoped VMEM on v5e/v6e/v7x; splitting only adds overhead.
    out2d = pl.pallas_call(
        bn_add_relu_kernel,
        out_shape=jax.ShapeDtypeStruct((M, C), x_nchw.dtype),
        grid=(1,),
        in_specs=[
            pl.BlockSpec((M, C), lambda i: (0, 0)),
            pl.BlockSpec((M, C), lambda i: (0, 0)),
            pl.BlockSpec((1, C), lambda i: (0, 0)),
            pl.BlockSpec((1, C), lambda i: (0, 0)),
        ],
        out_specs=pl.BlockSpec((M, C), lambda i: (0, 0)),
        compiler_params=pltpu.CompilerParams(
            dimension_semantics=("arbitrary",),
        ),
    )(x2d, y2d, g2d, b2d)

    return out2d.reshape(N, HW, C).transpose(0, 2, 1).reshape(N, C, H, W)


def _reference(x, y, gamma, beta):
    mean = jnp.mean(x, axis=(0, 2, 3), keepdims=True)
    var = jnp.mean((x - mean) ** 2, axis=(0, 2, 3), keepdims=True)
    xhat = (x - mean) * jax.lax.rsqrt(var + _EPS)
    bn = xhat * gamma.reshape(1, -1, 1, 1) + beta.reshape(1, -1, 1, 1)
    return jnp.maximum(bn + y, 0.0)


# TODO(synk): BatchNorm2d's running_mean/running_var momentum update (a
# training-time side effect using unbiased variance, not part of the returned
# tensor) is not emitted.

if __name__ == "__main__":
    # Shapes implied by the module: BatchNorm2d(784), inputs (1, 784, 7, 7).
    N, C, H, W = 1, 784, 7, 7
    key = jax.random.PRNGKey(0)
    k1, k2, k3, k4 = jax.random.split(key, 4)

    x202 = jax.random.normal(k1, (N, C, H, W), dtype=jnp.float32)
    x217 = jax.random.normal(k2, (N, C, H, W), dtype=jnp.float32)
    # Affine parameters perturbed around PyTorch's default init (weight=1,
    # bias=0) so the affine path is actually exercised.
    gamma = 1.0 + 0.1 * jax.random.normal(k3, (C,), dtype=jnp.float32)
    beta = 0.1 * jax.random.normal(k4, (C,), dtype=jnp.float32)

    out = batchnorm_add_relu(x202, x217, gamma, beta)
    out = jax.block_until_ready(out)

    ref = _reference(x202, x217, gamma, beta)
    assert out.shape == (N, C, H, W)
    assert jnp.allclose(out, ref, atol=1e-4, rtol=1e-4), (
        float(jnp.max(jnp.abs(out - ref))))

    print("KERNEL_OK")
</pallas_src>

<mosaic_0001>
module attributes {stable_mosaic.version = 11 : i64} {
  func.func @bn_add_relu_kernel(%arg0: i32, %arg1: memref<49x784xf32, #tpu.memory_space<vmem>>, %arg2: memref<49x784xf32, #tpu.memory_space<vmem>>, %arg3: memref<1x784xf32, #tpu.memory_space<vmem>>, %arg4: memref<1x784xf32, #tpu.memory_space<vmem>>, %arg5: memref<49x784xf32, #tpu.memory_space<vmem>>) attributes {dimension_semantics = [#tpu.dimension_semantics<arbitrary>], iteration_bounds = array<i64: 1>, scalar_prefetch = 0 : i64, scratch_operands = 0 : i64, tpu.core_type = #tpu.core_type<tc>, window_params = [{pipeline_mode = #tpu.pipeline_mode<synchronous>, transform_indices = @transform_0, window_bounds = array<i64: 49, 784>}, {pipeline_mode = #tpu.pipeline_mode<synchronous>, transform_indices = @transform_1, window_bounds = array<i64: 49, 784>}, {pipeline_mode = #tpu.pipeline_mode<synchronous>, transform_indices = @transform_2, window_bounds = array<i64: 1, 784>}, {pipeline_mode = #tpu.pipeline_mode<synchronous>, transform_indices = @transform_3, window_bounds = array<i64: 1, 784>}, {pipeline_mode = #tpu.pipeline_mode<synchronous>, transform_indices = @transform_4, window_bounds = array<i64: 49, 784>}]} {
    %c0 = arith.constant 0 : index
    %c0_0 = arith.constant 0 : index
    %0 = vector.load %arg1[%c0, %c0_0] : memref<49x784xf32, #tpu.memory_space<vmem>>, vector<49x784xf32>
    %cst = arith.constant dense<0.000000e+00> : vector<784xf32>
    %1 = vector.multi_reduction <add>, %0, %cst [0] : vector<49x784xf32> to vector<784xf32>
    %2 = vector.shape_cast %1 : vector<784xf32> to vector<1x784xf32>
    %cst_1 = arith.constant 0.0204081628 : f32
    %3 = vector.broadcast %cst_1 : f32 to vector<1x784xf32>
    %4 = arith.mulf %2, %3 : vector<1x784xf32>
    %c0_2 = arith.constant 0 : index
    %c0_3 = arith.constant 0 : index
    %5 = vector.load %arg1[%c0_2, %c0_3] : memref<49x784xf32, #tpu.memory_space<vmem>>, vector<49x784xf32>
    %6 = vector.broadcast %4 : vector<1x784xf32> to vector<49x784xf32>
    %7 = arith.subf %5, %6 : vector<49x784xf32>
    %8 = arith.mulf %7, %7 : vector<49x784xf32>
    %cst_4 = arith.constant dense<0.000000e+00> : vector<784xf32>
    %9 = vector.multi_reduction <add>, %8, %cst_4 [0] : vector<49x784xf32> to vector<784xf32>
    %10 = vector.shape_cast %9 : vector<784xf32> to vector<1x784xf32>
    %cst_5 = arith.constant 0.0204081628 : f32
    %11 = vector.broadcast %cst_5 : f32 to vector<1x784xf32>
    %12 = arith.mulf %10, %11 : vector<1x784xf32>
    %cst_6 = arith.constant 9.99999974E-6 : f32
    %13 = vector.broadcast %cst_6 : f32 to vector<1x784xf32>
    %14 = arith.addf %12, %13 : vector<1x784xf32>
    %15 = math.rsqrt %14 : vector<1x784xf32>
    %c0_7 = arith.constant 0 : index
    %c0_8 = arith.constant 0 : index
    %16 = vector.load %arg3[%c0_7, %c0_8] : memref<1x784xf32, #tpu.memory_space<vmem>>, vector<1x784xf32>
    %17 = arith.mulf %16, %15 : vector<1x784xf32>
    %c0_9 = arith.constant 0 : index
    %c0_10 = arith.constant 0 : index
    %18 = vector.load %arg4[%c0_9, %c0_10] : memref<1x784xf32, #tpu.memory_space<vmem>>, vector<1x784xf32>
    %19 = arith.mulf %4, %17 : vector<1x784xf32>
    %20 = arith.subf %18, %19 : vector<1x784xf32>
    %c0_11 = arith.constant 0 : index
    %c0_12 = arith.constant 0 : index
    %21 = vector.load %arg1[%c0_11, %c0_12] : memref<49x784xf32, #tpu.memory_space<vmem>>, vector<49x784xf32>
    %22 = vector.broadcast %17 : vector<1x784xf32> to vector<49x784xf32>
    %23 = arith.mulf %21, %22 : vector<49x784xf32>
    %24 = vector.broadcast %20 : vector<1x784xf32> to vector<49x784xf32>
    %25 = arith.addf %23, %24 : vector<49x784xf32>
    %c0_13 = arith.constant 0 : index
    %c0_14 = arith.constant 0 : index
    %26 = vector.load %arg2[%c0_13, %c0_14] : memref<49x784xf32, #tpu.memory_space<vmem>>, vector<49x784xf32>
    %27 = arith.addf %25, %26 : vector<49x784xf32>
    %cst_15 = arith.constant 0.000000e+00 : f32
    %28 = vector.broadcast %cst_15 : f32 to vector<49x784xf32>
    %29 = arith.maximumf %27, %28 : vector<49x784xf32>
    %c0_16 = arith.constant 0 : index
    %c0_17 = arith.constant 0 : index
    %30 = vector.load %arg5[%c0_16, %c0_17] : memref<49x784xf32, #tpu.memory_space<vmem>>, vector<49x784xf32>
    tpu.vector_store %arg5[%c0_16, %c0_17], %29 {strides = array<i32>} : memref<49x784xf32, #tpu.memory_space<vmem>>, vector<49x784xf32>,
    return
  }
  func.func @transform_0(%arg0: i32) -> (i32, i32) {
    %c0_i32 = arith.constant 0 : i32
    %c0_i32_0 = arith.constant 0 : i32
    %c0_i32_1 = arith.constant 0 : i32
    return %c0_i32, %c0_i32_0 : i32, i32
  }
  func.func @transform_1(%arg0: i32) -> (i32, i32) {
    %c0_i32 = arith.constant 0 : i32
    %c0_i32_0 = arith.constant 0 : i32
    %c0_i32_1 = arith.constant 0 : i32
    return %c0_i32, %c0_i32_0 : i32, i32
  }
  func.func @transform_2(%arg0: i32) -> (i32, i32) {
    %c0_i32 = arith.constant 0 : i32
    %c0_i32_0 = arith.constant 0 : i32
    %c0_i32_1 = arith.constant 0 : i32
    return %c0_i32, %c0_i32_0 : i32, i32
  }
  func.func @transform_3(%arg0: i32) -> (i32, i32) {
    %c0_i32 = arith.constant 0 : i32
    %c0_i32_0 = arith.constant 0 : i32
    %c0_i32_1 = arith.constant 0 : i32
    return %c0_i32, %c0_i32_0 : i32, i32
  }
  func.func @transform_4(%arg0: i32) -> (i32, i32) {
    %c0_i32 = arith.constant 0 : i32
    %c0_i32_0 = arith.constant 0 : i32
    %c0_i32_1 = arith.constant 0 : i32
    return %c0_i32, %c0_i32_0 : i32, i32
  }
}

</mosaic_0001>

<llo_original>
// kernel: tpu_custom_call.1
$region0: #{tpu_custom_call.1}
  #allocation0 [shape = 'u32[]', space=smem, size = 0x4, offset = 0x4, fixed_abs, tag = 'smem constant byte address 0x4 - core index']
  #allocation1 [shape = 'u32[144,128]{1,0:T(1,128)}', space=vmem, size = 0x12000, scoped, tag = 'internal scratch']
  %s0 = inlined_call_operand.hbm [shape: f32[49,784], index: 0, kind: input, shape index: {}]
  %s1 = inlined_call_operand.hbm [shape: f32[49,784], index: 1, kind: input, shape index: {}]
  %s2 = inlined_call_operand.vmem [shape: f32[1,784], index: 2, kind: input, shape index: {}]
  %s3 = inlined_call_operand.hbm [shape: f32[1,784], index: 3, kind: input, shape index: {}]
  %s4 = inlined_call_operand.hbm [shape: f32[49,784], index: 4, kind: output, shape index: {}]
  %s5 = sld [smem:[#allocation0]]
  $region38: #{tpu_custom_call.1} parent=0
    _
  %s7 = ssub.s32 1, %s5
  %s8 = scalar_select 0, %s7, %s5
  $region1: #{tpu_custom_call.1} parent=0
    #allocation2 [shape = 'u8[200704]{0}', space=vmem, size = 0x31000, scoped, tag = 'input window, operand 0, single buffered']
    #allocation3 [shape = 's32[1]{0}', space=sflag, size = 0x4, scoped, tag = 'scoped memory for tpu_custom_call.1']
    #allocation4 [shape = 's32[1]{0}', space=sflag, size = 0x4, scoped, tag = 'scoped memory for tpu_custom_call.1']
    #allocation5 [shape = 'u8[200704]{0}', space=vmem, size = 0x31000, scoped, tag = 'input window, operand 1, single buffered']
    #allocation6 [shape = 's32[1]{0}', space=sflag, size = 0x4, scoped, tag = 'scoped memory for tpu_custom_call.1']
    #allocation7 [shape = 'u8[3584]{0}', space=vmem, size = 0x1000, scoped, tag = 'input window, operand 3, single buffered']
    #allocation8 [shape = 'u8[200704]{0}', space=vmem, size = 0x31000, scoped, tag = 'output window, operand 0, single buffered']
    %9 = vsyncpa [#allocation3], 0
    %10 = vsyncpa [#allocation6], 0
    %11 = vsyncpa [#allocation4], 0
    // Predicated region
    $region2: #{tpu_custom_call.1} parent=1 // pred_check
      _
    $region3: #{tpu_custom_call.1} parent=1 // pred_check_branch
      %13 = sbr.rel (0) target = $region5
    $region4: #{tpu_custom_call.1} parent=1 // pred_region
      %s15 = ssub.s32 6272, 6272
      %16 = vsyncadd [#allocation3], %s15
      %s17 = sshll.u32 [#allocation2], 4
      %s18 = int_to_ptr.vmem [resolvable:$true] %s17
      %23 = dma.hbm_to_vmem [thread:$0]  %s0, 6272, %s18, [#allocation3], 896, 896, 56
    $region5: #{tpu_custom_call.1} parent=1 // pred_fallthru
      _
    // Predicated region
    $region6: #{tpu_custom_call.1} parent=1 // pred_check
      _
    $region7: #{tpu_custom_call.1} parent=1 // pred_check_branch
      %25 = sbr.rel (0) target = $region9
    $region8: #{tpu_custom_call.1} parent=1 // pred_region
      %s27 = ssub.s32 6272, 6272
      %28 = vsyncadd [#allocation6], %s27
      %s29 = sshll.u32 [#allocation5], 4
      %s30 = int_to_ptr.vmem [resolvable:$true] %s29
      %35 = dma.hbm_to_vmem [thread:$0]  %s1, 6272, %s30, [#allocation6], 896, 896, 56
    $region9: #{tpu_custom_call.1} parent=1 // pred_fallthru
      _
    // Predicated region
    $region10: #{tpu_custom_call.1} parent=1 // pred_check
      _
    $region11: #{tpu_custom_call.1} parent=1 // pred_check_branch
      %37 = sbr.rel (0) target = $region13
    $region12: #{tpu_custom_call.1} parent=1 // pred_region
      _
    $region13: #{tpu_custom_call.1} parent=1 // pred_fallthru
      _
    // Predicated region
    $region14: #{tpu_custom_call.1} parent=1 // pred_check
      _
    $region15: #{tpu_custom_call.1} parent=1 // pred_check_branch
      %39 = sbr.rel (0) target = $region17
    $region16: #{tpu_custom_call.1} parent=1 // pred_region
      %s41 = ssub.s32 112, 112
      %42 = vsyncadd [#allocation6], %s41
      %s44 = sshll.u32 [#allocation7], 4
      %s45 = int_to_ptr.vmem [resolvable:$true] %s44
      %47 = dma.hbm_to_vmem [thread:$0]  %s3, 112, %s45, [#allocation6]
    $region17: #{tpu_custom_call.1} parent=1 // pred_fallthru
      _
    // Predicated region
    $region18: #{tpu_custom_call.1} parent=1 // pred_check
      _
    $region19: #{tpu_custom_call.1} parent=1 // pred_check_branch
      %49 = sbr.rel (0) target = $region21
    $region20: #{tpu_custom_call.1} parent=1 // pred_region
      %50 = dma.done [#allocation3], 6272
    $region21: #{tpu_custom_call.1} parent=1 // pred_fallthru
      _
    // Predicated region
    $region22: #{tpu_custom_call.1} parent=1 // pred_check
      _
    $region23: #{tpu_custom_call.1} parent=1 // pred_check_branch
      %52 = sbr.rel (0) target = $region25
    $region24: #{tpu_custom_call.1} parent=1 // pred_region
      %53 = dma.done [#allocation6], 6272
    $region25: #{tpu_custom_call.1} parent=1 // pred_fallthru
      _
    // Predicated region
    $region26: #{tpu_custom_call.1} parent=1 // pred_check
      _
    $region27: #{tpu_custom_call.1} parent=1 // pred_check_branch
      %55 = sbr.rel (0) target = $region29
    $region28: #{tpu_custom_call.1} parent=1 // pred_region
      %56 = dma.done [#allocation6], 112
    $region29: #{tpu_custom_call.1} parent=1 // pred_fallthru
      _
    %v57 = vld [vmem:[#allocation2] sm:$0xff]
    %v58 = vld [vmem:[#allocation2 + $0x8] sm:$0xff]
    %v59 = vld [vmem:[#allocation2 + $0x10] sm:$0xff]
    %v60 = vld [vmem:[#allocation2 + $0x18] sm:$0xff]
    %v61 = vld [vmem:[#allocation2 + $0x20] sm:$0xff]
    %v62 = vld [vmem:[#allocation2 + $0x28] sm:$0xff]
    %v63 = vld [vmem:[#allocation2 + $0x30] sm:$0xff]
    %v64 = vld [vmem:[#allocation2 + $0x38] sm:$0xff]
    %v65 = vld [vmem:[#allocation2 + $0x40] sm:$0xff]
    %v66 = vld [vmem:[#allocation2 + $0x48] sm:$0xff]
    %v67 = vld [vmem:[#allocation2 + $0x50] sm:$0xff]
    %v68 = vld [vmem:[#allocation2 + $0x58] sm:$0xff]
    %v69 = vld [vmem:[#allocation2 + $0x60] sm:$0xff]
    %v70 = vld [vmem:[#allocation2 + $0x68] sm:$0xff]
    %v71 = vld [vmem:[#allocation2 + $0x70] sm:$0xff]
    %v72 = vld [vmem:[#allocation2 + $0x78] sm:$0xff]
    %v73 = vld [vmem:[#allocation2 + $0x80] sm:$0xff]
    %v74 = vld [vmem:[#allocation2 + $0x88] sm:$0xff]
    %v75 = vld [vmem:[#allocation2 + $0x90] sm:$0xff]
    %v76 = vld [vmem:[#allocation2 + $0x98] sm:$0xff]
    %v77 = vld [vmem:[#allocation2 + $0xa0] sm:$0xff]
    %v78 = vld [vmem:[#allocation2 + $0xa8] sm:$0xff]
    %v79 = vld [vmem:[#allocation2 + $0xb0] sm:$0xff]
    %v80 = vld [vmem:[#allocation2 + $0xb8] sm:$0xff]
    %v81 = vld [vmem:[#allocation2 + $0xc0] sm:$0xff]
    %v82 = vld [vmem:[#allocation2 + $0xc8] sm:$0xff]
    %v83 = vld [vmem:[#allocation2 + $0xd0] sm:$0xff]
    %v84 = vld [vmem:[#allocation2 + $0xd8] sm:$0xff]
    %v85 = vld [vmem:[#allocation2 + $0xe0] sm:$0xff]
    %v86 = vld [vmem:[#allocation2 + $0xe8] sm:$0xff]
    %v87 = vld [vmem:[#allocation2 + $0xf0] sm:$0xff]
    %v88 = vld [vmem:[#allocation2 + $0xf8] sm:$0xff]
    %v89 = vld [vmem:[#allocation2 + $0x100] sm:$0xff]
    %v90 = vld [vmem:[#allocation2 + $0x108] sm:$0xff]
    %v91 = vld [vmem:[#allocation2 + $0x110] sm:$0xff]
    %v92 = vld [vmem:[#allocation2 + $0x118] sm:$0xff]
    %v93 = vld [vmem:[#allocation2 + $0x120] sm:$0xff]
    %v94 = vld [vmem:[#allocation2 + $0x128] sm:$0xff]
    %v95 = vld [vmem:[#allocation2 + $0x130] sm:$0xff]
    %v96 = vld [vmem:[#allocation2 + $0x138] sm:$0xff]
    %v97 = vld [vmem:[#allocation2 + $0x140] sm:$0xff]
    %v98 = vld [vmem:[#allocation2 + $0x148] sm:$0xff]
    %v99 = vld [vmem:[#allocation2 + $0x150] sm:$0x1]
    %v100 = vld [vmem:[#allocation2 + $0x158] sm:$0x1]
    %v101 = vld [vmem:[#allocation2 + $0x160] sm:$0x1]
    %v102 = vld [vmem:[#allocation2 + $0x168] sm:$0x1]
    %v103 = vld [vmem:[#allocation2 + $0x170] sm:$0x1]
    %v104 = vld [vmem:[#allocation2 + $0x178] sm:$0x1]
    %v105 = vld [vmem:[#allocation2 + $0x180] sm:$0x1]
    %v106 = vadd.f32 %v57, %v64
    %v107 = vadd.f32 %v106, %v71
    %v108 = vadd.f32 %v107, %v78
    %v109 = vadd.f32 %v108, %v85
    %v110 = vadd.f32 %v109, %v92
    %vm111 = vcmask 1040384
    %v112 = vsel %vm111, %v99, 0.0
    %v113 = vadd.f32 %v110, %v112
    %v114 = vrot.slane %v113, 4
    %v115 = vadd.f32 %v113, %v114
    %v116 = vrot.slane %v115, 2
    %v117 = vadd.f32 %v115, %v116
    %v118 = vrot.slane %v117, 1
    %v119 = vadd.f32 %v117, %v118
    %v120 = vadd.f32 %v58, %v65
    %v121 = vadd.f32 %v120, %v72
    %v122 = vadd.f32 %v121, %v79
    %v123 = vadd.f32 %v122, %v86
    %v124 = vadd.f32 %v123, %v93
    %v125 = vsel %vm111, %v100, 0.0
    %v126 = vadd.f32 %v124, %v125
    %v127 = vrot.slane %v126, 4
    %v128 = vadd.f32 %v126, %v127
    %v129 = vrot.slane %v128, 2
    %v130 = vadd.f32 %v128, %v129
    %v131 = vrot.slane %v130, 1
    %v132 = vadd.f32 %v130, %v131
    %v133 = vadd.f32 %v59, %v66
    %v134 = vadd.f32 %v133, %v73
    %v135 = vadd.f32 %v134, %v80
    %v136 = vadd.f32 %v135, %v87
    %v137 = vadd.f32 %v136, %v94
    %v138 = vsel %vm111, %v101, 0.0
    %v139 = vadd.f32 %v137, %v138
    %v140 = vrot.slane %v139, 4
    %v141 = vadd.f32 %v139, %v140
    %v142 = vrot.slane %v141, 2
    %v143 = vadd.f32 %v141, %v142
    %v144 = vrot.slane %v143, 1
    %v145 = vadd.f32 %v143, %v144
    %v146 = vadd.f32 %v60, %v67
    %v147 = vadd.f32 %v146, %v74
    %v148 = vadd.f32 %v147, %v81
    %v149 = vadd.f32 %v148, %v88
    %v150 = vadd.f32 %v149, %v95
    %v151 = vsel %vm111, %v102, 0.0
    %v152 = vadd.f32 %v150, %v151
    %v153 = vrot.slane %v152, 4
    %v154 = vadd.f32 %v152, %v153
    %v155 = vrot.slane %v154, 2
    %v156 = vadd.f32 %v154, %v155
    %v157 = vrot.slane %v156, 1
    %v158 = vadd.f32 %v156, %v157
    %v159 = vadd.f32 %v61, %v68
    %v160 = vadd.f32 %v159, %v75
    %v161 = vadd.f32 %v160, %v82
    %v162 = vadd.f32 %v161, %v89
    %v163 = vadd.f32 %v162, %v96
    %v164 = vsel %vm111, %v103, 0.0
    %v165 = vadd.f32 %v163, %v164
    %v166 = vrot.slane %v165, 4
    %v167 = vadd.f32 %v165, %v166
    %v168 = vrot.slane %v167, 2
    %v169 = vadd.f32 %v167, %v168
    %v170 = vrot.slane %v169, 1
    %v171 = vadd.f32 %v169, %v170
    %v172 = vadd.f32 %v62, %v69
    %v173 = vadd.f32 %v172, %v76
    %v174 = vadd.f32 %v173, %v83
    %v175 = vadd.f32 %v174, %v90
    %v176 = vadd.f32 %v175, %v97
    %v177 = vsel %vm111, %v104, 0.0
    %v178 = vadd.f32 %v176, %v177
    %v179 = vrot.slane %v178, 4
    %v180 = vadd.f32 %v178, %v179
    %v181 = vrot.slane %v180, 2
    %v182 = vadd.f32 %v180, %v181
    %v183 = vrot.slane %v182, 1
    %v184 = vadd.f32 %v182, %v183
    %vm185 = vcmask 130048
    %v186 = vsel %vm185, %v63, 0.0
    %v187 = vsel %vm185, %v70, 0.0
    %v188 = vadd.f32 %v186, %v187
    %v189 = vsel %vm185, %v77, 0.0
    %v190 = vadd.f32 %v188, %v189
    %v191 = vsel %vm185, %v84, 0.0
    %v192 = vadd.f32 %v190, %v191
    %v193 = vsel %vm185, %v91, 0.0
    %v194 = vadd.f32 %v192, %v193
    %v195 = vsel %vm185, %v98, 0.0
    %v196 = vadd.f32 %v194, %v195
    %vm197 = vcmask 122880
    %v198 = vsel %vm197, %v105, 0.0
    %v199 = vadd.f32 %v196, %v198
    %v200 = vrot.slane %v199, 4
    %v201 = vadd.f32 %v199, %v200
    %v202 = vrot.slane %v201, 2
    %v203 = vadd.f32 %v201, %v202
    %v204 = vrot.slane %v203, 1
    %v205 = vadd.f32 %v203, %v204
    %v206 = vmul.f32 %v119, 0.020408163
    %v207 = vmul.f32 %v132, 0.020408163
    %v208 = vmul.f32 %v145, 0.020408163
    %v209 = vmul.f32 %v158, 0.020408163
    %v210 = vmul.f32 %v171, 0.020408163
    %v211 = vmul.f32 %v184, 0.020408163
    %v212 = vmul.f32 %v205, 0.020408163
    %v213 = vsub.f32 %v57, %v206
    %v214 = vsub.f32 %v58, %v207
    %v215 = vsub.f32 %v59, %v208
    %v216 = vsub.f32 %v60, %v209
    %v217 = vsub.f32 %v61, %v210
    %v218 = vsub.f32 %v62, %v211
    %v219 = vsub.f32 %v63, %v212
    %v220 = vsub.f32 %v64, %v206
    %v221 = vsub.f32 %v65, %v207
    %v222 = vsub.f32 %v66, %v208
    %v223 = vsub.f32 %v67, %v209
    %v224 = vsub.f32 %v68, %v210
    %v225 = vsub.f32 %v69, %v211
    %v226 = vsub.f32 %v70, %v212
    %v227 = vsub.f32 %v71, %v206
    %v228 = vsub.f32 %v72, %v207
    %v229 = vsub.f32 %v73, %v208
    %v230 = vsub.f32 %v74, %v209
    %v231 = vsub.f32 %v75, %v210
    %v232 = vsub.f32 %v76, %v211
    %v233 = vsub.f32 %v77, %v212
    %v234 = vsub.f32 %v78, %v206
    %v235 = vsub.f32 %v79, %v207
    %v236 = vsub.f32 %v80, %v208
    %v237 = vsub.f32 %v81, %v209
    %v238 = vsub.f32 %v82, %v210
    %v239 = vsub.f32 %v83, %v211
    %v240 = vsub.f32 %v84, %v212
    %v241 = vsub.f32 %v85, %v206
    %v242 = vsub.f32 %v86, %v207
    %v243 = vsub.f32 %v87, %v208
    %v244 = vsub.f32 %v88, %v209
    %v245 = vsub.f32 %v89, %v210
    %v246 = vsub.f32 %v90, %v211
    %v247 = vsub.f32 %v91, %v212
    %v248 = vsub.f32 %v92, %v206
    %v249 = vsub.f32 %v93, %v207
    %v250 = vsub.f32 %v94, %v208
    %v251 = vsub.f32 %v95, %v209
    %v252 = vsub.f32 %v96, %v210
    %v253 = vsub.f32 %v97, %v211
    %v254 = vsub.f32 %v98, %v212
    %v255 = vsub.f32 %v99, %v206
    %v256 = vsub.f32 %v100, %v207
    %v257 = vsub.f32 %v101, %v208
    %v258 = vsub.f32 %v102, %v209
    %v259 = vsub.f32 %v103, %v210
    %v260 = vsub.f32 %v104, %v211
    %v261 = vsub.f32 %v105, %v212
    %v262 = vmul.f32 %v213, %v213
    %v263 = vmul.f32 %v214, %v214
    %v264 = vmul.f32 %v215, %v215
    %v265 = vmul.f32 %v216, %v216
    %v266 = vmul.f32 %v217, %v217
    %v267 = vmul.f32 %v218, %v218
    %v268 = vmul.f32 %v219, %v219
    %v269 = vmul.f32 %v220, %v220
    %v270 = vmul.f32 %v221, %v221
    %v271 = vmul.f32 %v222, %v222
    %v272 = vmul.f32 %v223, %v223
    %v273 = vmul.f32 %v224, %v224
    %v274 = vmul.f32 %v225, %v225
    %v275 = vmul.f32 %v226, %v226
    %v276 = vmul.f32 %v227, %v227
    %v277 = vmul.f32 %v228, %v228
    %v278 = vmul.f32 %v229, %v229
    %v279 = vmul.f32 %v230, %v230
    %v280 = vmul.f32 %v231, %v231
    %v281 = vmul.f32 %v232, %v232
    %v282 = vmul.f32 %v233, %v233
    %v283 = vmul.f32 %v234, %v234
    %v284 = vmul.f32 %v235, %v235
    %v285 = vmul.f32 %v236, %v236
    %v286 = vmul.f32 %v237, %v237
    %v287 = vmul.f32 %v238, %v238
    %v288 = vmul.f32 %v239, %v239
    %v289 = vmul.f32 %v240, %v240
    %v290 = vmul.f32 %v241, %v241
    %v291 = vmul.f32 %v242, %v242
    %v292 = vmul.f32 %v243, %v243
    %v293 = vmul.f32 %v244, %v244
    %v294 = vmul.f32 %v245, %v245
    %v295 = vmul.f32 %v246, %v246
    %v296 = vmul.f32 %v247, %v247
    %v297 = vmul.f32 %v248, %v248
    %v298 = vmul.f32 %v249, %v249
    %v299 = vmul.f32 %v250, %v250
    %v300 = vmul.f32 %v251, %v251
    %v301 = vmul.f32 %v252, %v252
    %v302 = vmul.f32 %v253, %v253
    %v303 = vmul.f32 %v254, %v254
    %v304 = vmul.f32 %v255, %v255
    %v305 = vmul.f32 %v256, %v256
    %v306 = vmul.f32 %v257, %v257
    %v307 = vmul.f32 %v258, %v258
    %v308 = vmul.f32 %v259, %v259
    %v309 = vmul.f32 %v260, %v260
    %v310 = vmul.f32 %v261, %v261
    %v311 = vadd.f32 %v262, %v269
    %v312 = vadd.f32 %v311, %v276
    %v313 = vadd.f32 %v312, %v283
    %v314 = vadd.f32 %v313, %v290
    %v315 = vadd.f32 %v314, %v297
    %v316 = vsel %vm111, %v304, 0.0
    %v317 = vadd.f32 %v315, %v316
    %v318 = vrot.slane %v317, 4
    %v319 = vadd.f32 %v317, %v318
    %v320 = vrot.slane %v319, 2
    %v321 = vadd.f32 %v319, %v320
    %v322 = vrot.slane %v321, 1
    %v323 = vadd.f32 %v321, %v322
    %v324 = vadd.f32 %v263, %v270
    %v325 = vadd.f32 %v324, %v277
    %v326 = vadd.f32 %v325, %v284
    %v327 = vadd.f32 %v326, %v291
    %v328 = vadd.f32 %v327, %v298
    %v329 = vsel %vm111, %v305, 0.0
    %v330 = vadd.f32 %v328, %v329
    %v331 = vrot.slane %v330, 4
    %v332 = vadd.f32 %v330, %v331
    %v333 = vrot.slane %v332, 2
    %v334 = vadd.f32 %v332, %v333
    %v335 = vrot.slane %v334, 1
    %v336 = vadd.f32 %v334, %v335
    %v337 = vadd.f32 %v264, %v271
    %v338 = vadd.f32 %v337, %v278
    %v339 = vadd.f32 %v338, %v285
    %v340 = vadd.f32 %v339, %v292
    %v341 = vadd.f32 %v340, %v299
    %v342 = vsel %vm111, %v306, 0.0
    %v343 = vadd.f32 %v341, %v342
    %v344 = vrot.slane %v343, 4
    %v345 = vadd.f32 %v343, %v344
    %v346 = vrot.slane %v345, 2
    %v347 = vadd.f32 %v345, %v346
    %v348 = vrot.slane %v347, 1
    %v349 = vadd.f32 %v347, %v348
    %v350 = vadd.f32 %v265, %v272
    %v351 = vadd.f32 %v350, %v279
    %v352 = vadd.f32 %v351, %v286
    %v353 = vadd.f32 %v352, %v293
    %v354 = vadd.f32 %v353, %v300
    %v355 = vsel %vm111, %v307, 0.0
    %v356 = vadd.f32 %v354, %v355
    %v357 = vrot.slane %v356, 4
    %v358 = vadd.f32 %v356, %v357
    %v359 = vrot.slane %v358, 2
    %v360 = vadd.f32 %v358, %v359
    %v361 = vrot.slane %v360, 1
    %v362 = vadd.f32 %v360, %v361
    %v363 = vadd.f32 %v266, %v273
    %v364 = vadd.f32 %v363, %v280
    %v365 = vadd.f32 %v364, %v287
    %v366 = vadd.f32 %v365, %v294
    %v367 = vadd.f32 %v366, %v301
    %v368 = vsel %vm111, %v308, 0.0
    %v369 = vadd.f32 %v367, %v368
    %v370 = vrot.slane %v369, 4
    %v371 = vadd.f32 %v369, %v370
    %v372 = vrot.slane %v371, 2
    %v373 = vadd.f32 %v371, %v372
    %v374 = vrot.slane %v373, 1
    %v375 = vadd.f32 %v373, %v374
    %v376 = vadd.f32 %v267, %v274
    %v377 = vadd.f32 %v376, %v281
    %v378 = vadd.f32 %v377, %v288
    %v379 = vadd.f32 %v378, %v295
    %v380 = vadd.f32 %v379, %v302
    %v381 = vsel %vm111, %v309, 0.0
    %v382 = vadd.f32 %v380, %v381
    %v383 = vrot.slane %v382, 4
    %v384 = vadd.f32 %v382, %v383
    %v385 = vrot.slane %v384, 2
    %v386 = vadd.f32 %v384, %v385
    %v387 = vrot.slane %v386, 1
    %v388 = vadd.f32 %v386, %v387
    %v389 = vsel %vm185, %v268, 0.0
    %v390 = vsel %vm185, %v275, 0.0
    %v391 = vadd.f32 %v389, %v390
    %v392 = vsel %vm185, %v282, 0.0
    %v393 = vadd.f32 %v391, %v392
    %v394 = vsel %vm185, %v289, 0.0
    %v395 = vadd.f32 %v393, %v394
    %v396 = vsel %vm185, %v296, 0.0
    %v397 = vadd.f32 %v395, %v396
    %v398 = vsel %vm185, %v303, 0.0
    %v399 = vadd.f32 %v397, %v398
    %v400 = vsel %vm197, %v310, 0.0
    %v401 = vadd.f32 %v399, %v400
    %v402 = vrot.slane %v401, 4
    %v403 = vadd.f32 %v401, %v402
    %v404 = vrot.slane %v403, 2
    %v405 = vadd.f32 %v403, %v404
    %v406 = vrot.slane %v405, 1
    %v407 = vadd.f32 %v405, %v406
    %v408 = vmul.f32 %v323, 0.020408163
    %v409 = vmul.f32 %v336, 0.020408163
    %v410 = vmul.f32 %v349, 0.020408163
    %v411 = vmul.f32 %v362, 0.020408163
    %v412 = vmul.f32 %v375, 0.020408163
    %v413 = vmul.f32 %v388, 0.020408163
    %v414 = vmul.f32 %v407, 0.020408163
    %v415 = vadd.f32 %v408, 1e-05
    %v416 = vadd.f32 %v409, 1e-05
    %v417 = vadd.f32 %v410, 1e-05
    %v418 = vadd.f32 %v411, 1e-05
    %v419 = vadd.f32 %v412, 1e-05
    %v420 = vadd.f32 %v413, 1e-05
    %v421 = vadd.f32 %v414, 1e-05
    %v422 = vrsqrt.pop %v415
    %v423 = vrsqrt.pop %v416
    %v424 = vrsqrt.pop %v417
    %v425 = vrsqrt.pop %v418
    %v426 = vrsqrt.pop %v419
    %v427 = vrsqrt.pop %v420
    %v428 = vrsqrt.pop %v421
    %v429 = vld [vmem:[%s2] sm:$0x7f]
    %v437 = vcombine.low %v422, %v423
    %v438 = vcombine.low %v424, %v425
    %v439 = vcombine.low %v426, %v427
    %v441 = vunpack.c.l.s4 1966171168
    %v442 = vunpack.c.0.s8 %v441
    %v443 = vlaneseq
    %v444 = vshrl.u32 %v443, 7
    %v445 = vsub.s32 %v442, %v444
    %v446 = vrot.slane %v437, %v445
    %v448 = vunpack.c.l.s4 1966171168
    %v449 = vunpack.c.0.s8 %v448
    %v450 = vlaneseq
    %v451 = vshrl.u32 %v450, 7
    %v452 = vsub.s32 %v449, %v451
    %v453 = vrot.slane %v438, %v452
    %v455 = vunpack.c.l.s4 1966171168
    %v456 = vunpack.c.0.s8 %v455
    %v457 = vlaneseq
    %v458 = vshrl.u32 %v457, 7
    %v459 = vsub.s32 %v456, %v458
    %v460 = vrot.slane %v439, %v459
    %v462 = vunpack.c.l.s4 1966171168
    %v463 = vunpack.c.0.s8 %v462
    %v464 = vlaneseq
    %v465 = vshrl.u32 %v464, 7
    %v466 = vsub.s32 %v463, %v465
    %v467 = vrot.slane %v428, %v466
    %v468 = vcombine.low %v446, %v453
    %v469 = vcombine.low %v460, %v467
    %v471 = vunpack.c.l.s4 1966171168
    %v472 = vunpack.c.0.s8 %v471
    %v473 = vlaneseq
    %v474 = vshrl.u32 %v473, 7
    %v475 = vsub.s32 %v472, %v474
    %v476 = vrot.slane %v468, %v475
    %v478 = vunpack.c.l.s4 1966171168
    %v479 = vunpack.c.0.s8 %v478
    %v480 = vlaneseq
    %v481 = vshrl.u32 %v480, 7
    %v482 = vsub.s32 %v479, %v481
    %v483 = vrot.slane %v469, %v482
    %v484 = vcombine.low %v476, %v483
    %v486 = vmul.f32 %v429, %v484
    %v487 = vld [vmem:[#allocation7] sm:$0x7f]
    %v489 = vlaneseq
    %v490 = vshrl.u32 %v489, 7
    %v491 = vsub.s32 0, %v490
    %v492 = vrot.slane %v486, %v491
    %v493 = vlaneseq
    %v494 = vshrl.u32 %v493, 7
    %v495 = vsub.s32 1, %v494
    %v496 = vrot.slane %v486, %v495
    %v497 = vlaneseq
    %v498 = vshrl.u32 %v497, 7
    %v499 = vsub.s32 2, %v498
    %v500 = vrot.slane %v486, %v499
    %v501 = vlaneseq
    %v502 = vshrl.u32 %v501, 7
    %v503 = vsub.s32 3, %v502
    %v504 = vrot.slane %v486, %v503
    %v505 = vlaneseq
    %v506 = vshrl.u32 %v505, 7
    %v507 = vsub.s32 4, %v506
    %v508 = vrot.slane %v486, %v507
    %v509 = vlaneseq
    %v510 = vshrl.u32 %v509, 7
    %v511 = vsub.s32 5, %v510
    %v512 = vrot.slane %v486, %v511
    %v513 = vlaneseq
    %v514 = vshrl.u32 %v513, 7
    %v515 = vsub.s32 6, %v514
    %v516 = vrot.slane %v486, %v515
    %v524 = vmul.f32 %v206, %v492
    %v525 = vmul.f32 %v207, %v496
    %v526 = vmul.f32 %v208, %v500
    %v527 = vmul.f32 %v209, %v504
    %v528 = vmul.f32 %v210, %v508
    %v529 = vmul.f32 %v211, %v512
    %v530 = vmul.f32 %v212, %v516
    %v538 = vcombine.low %v524, %v525
    %v539 = vcombine.low %v526, %v527
    %v540 = vcombine.low %v528, %v529
    %v542 = vunpack.c.l.s4 1966171168
    %v543 = vunpack.c.0.s8 %v542
    %v544 = vlaneseq
    %v545 = vshrl.u32 %v544, 7
    %v546 = vsub.s32 %v543, %v545
    %v547 = vrot.slane %v538, %v546
    %v549 = vunpack.c.l.s4 1966171168
    %v550 = vunpack.c.0.s8 %v549
    %v551 = vlaneseq
    %v552 = vshrl.u32 %v551, 7
    %v553 = vsub.s32 %v550, %v552
    %v554 = vrot.slane %v539, %v553
    %v556 = vunpack.c.l.s4 1966171168
    %v557 = vunpack.c.0.s8 %v556
    %v558 = vlaneseq
    %v559 = vshrl.u32 %v558, 7
    %v560 = vsub.s32 %v557, %v559
    %v561 = vrot.slane %v540, %v560
    %v563 = vunpack.c.l.s4 1966171168
    %v564 = vunpack.c.0.s8 %v563
    %v565 = vlaneseq
    %v566 = vshrl.u32 %v565, 7
    %v567 = vsub.s32 %v564, %v566
    %v568 = vrot.slane %v530, %v567
    %v569 = vcombine.low %v547, %v554
    %v570 = vcombine.low %v561, %v568
    %v572 = vunpack.c.l.s4 1966171168
    %v573 = vunpack.c.0.s8 %v572
    %v574 = vlaneseq
    %v575 = vshrl.u32 %v574, 7
    %v576 = vsub.s32 %v573, %v575
    %v577 = vrot.slane %v569, %v576
    %v579 = vunpack.c.l.s4 1966171168
    %v580 = vunpack.c.0.s8 %v579
    %v581 = vlaneseq
    %v582 = vshrl.u32 %v581, 7
    %v583 = vsub.s32 %v580, %v582
    %v584 = vrot.slane %v570, %v583
    %v585 = vcombine.low %v577, %v584
    %v587 = vsub.f32 %v487, %v585
    %v588 = vmul.f32 %v57, %v492
    %v589 = vmul.f32 %v58, %v496
    %v590 = vmul.f32 %v59, %v500
    %v591 = vmul.f32 %v60, %v504
    %v592 = vmul.f32 %v61, %v508
    %v593 = vmul.f32 %v62, %v512
    %v594 = vmul.f32 %v63, %v516
    %v595 = vmul.f32 %v64, %v492
    %v596 = vmul.f32 %v65, %v496
    %v597 = vmul.f32 %v66, %v500
    %v598 = vmul.f32 %v67, %v504
    %v599 = vmul.f32 %v68, %v508
    %v600 = vmul.f32 %v69, %v512
    %v601 = vmul.f32 %v70, %v516
    %v602 = vmul.f32 %v71, %v492
    %v603 = vmul.f32 %v72, %v496
    %v604 = vmul.f32 %v73, %v500
    %v605 = vmul.f32 %v74, %v504
    %v606 = vmul.f32 %v75, %v508
    %v607 = vmul.f32 %v76, %v512
    %v608 = vmul.f32 %v77, %v516
    %v609 = vmul.f32 %v78, %v492
    %v610 = vmul.f32 %v79, %v496
    %v611 = vmul.f32 %v80, %v500
    %v612 = vmul.f32 %v81, %v504
    %v613 = vmul.f32 %v82, %v508
    %v614 = vmul.f32 %v83, %v512
    %v615 = vmul.f32 %v84, %v516
    %v616 = vmul.f32 %v85, %v492
    %v617 = vmul.f32 %v86, %v496
    %v618 = vmul.f32 %v87, %v500
    %v619 = vmul.f32 %v88, %v504
    %v620 = vmul.f32 %v89, %v508
    %v621 = vmul.f32 %v90, %v512
    %v622 = vmul.f32 %v91, %v516
    %v623 = vmul.f32 %v92, %v492
    %v624 = vmul.f32 %v93, %v496
    %v625 = vmul.f32 %v94, %v500
    %v626 = vmul.f32 %v95, %v504
    %v627 = vmul.f32 %v96, %v508
    %v628 = vmul.f32 %v97, %v512
    %v629 = vmul.f32 %v98, %v516
    %v630 = vmul.f32 %v99, %v492
    %v631 = vmul.f32 %v100, %v496
    %v632 = vmul.f32 %v101, %v500
    %v633 = vmul.f32 %v102, %v504
    %v634 = vmul.f32 %v103, %v508
    %v635 = vmul.f32 %v104, %v512
    %v636 = vmul.f32 %v105, %v516
    %v638 = vlaneseq
    %v639 = vshrl.u32 %v638, 7
    %v640 = vsub.s32 0, %v639
    %v641 = vrot.slane %v587, %v640
    %v642 = vlaneseq
    %v643 = vshrl.u32 %v642, 7
    %v644 = vsub.s32 1, %v643
    %v645 = vrot.slane %v587, %v644
    %v646 = vlaneseq
    %v647 = vshrl.u32 %v646, 7
    %v648 = vsub.s32 2, %v647
    %v649 = vrot.slane %v587, %v648
    %v650 = vlaneseq
    %v651 = vshrl.u32 %v650, 7
    %v652 = vsub.s32 3, %v651
    %v653 = vrot.slane %v587, %v652
    %v654 = vlaneseq
    %v655 = vshrl.u32 %v654, 7
    %v656 = vsub.s32 4, %v655
    %v657 = vrot.slane %v587, %v656
    %v658 = vlaneseq
    %v659 = vshrl.u32 %v658, 7
    %v660 = vsub.s32 5, %v659
    %v661 = vrot.slane %v587, %v660
    %v662 = vlaneseq
    %v663 = vshrl.u32 %v662, 7
    %v664 = vsub.s32 6, %v663
    %v665 = vrot.slane %v587, %v664
    %v673 = vadd.f32 %v588, %v641
    %v674 = vadd.f32 %v589, %v645
    %v675 = vadd.f32 %v590, %v649
    %v676 = vadd.f32 %v591, %v653
    %v677 = vadd.f32 %v592, %v657
    %v678 = vadd.f32 %v593, %v661
    %v679 = vadd.f32 %v594, %v665
    %v680 = vadd.f32 %v595, %v641
    %v681 = vadd.f32 %v596, %v645
    %v682 = vadd.f32 %v597, %v649
    %v683 = vadd.f32 %v598, %v653
    %v684 = vadd.f32 %v599, %v657
    %v685 = vadd.f32 %v600, %v661
    %v686 = vadd.f32 %v601, %v665
    %v687 = vadd.f32 %v602, %v641
    %v688 = vadd.f32 %v603, %v645
    %v689 = vadd.f32 %v604, %v649
    %v690 = vadd.f32 %v605, %v653
    %v691 = vadd.f32 %v606, %v657
    %v692 = vadd.f32 %v607, %v661
    %v693 = vadd.f32 %v608, %v665
    %v694 = vadd.f32 %v609, %v641
    %v695 = vadd.f32 %v610, %v645
    %v696 = vadd.f32 %v611, %v649
    %v697 = vadd.f32 %v612, %v653
    %v698 = vadd.f32 %v613, %v657
    %v699 = vadd.f32 %v614, %v661
    %v700 = vadd.f32 %v615, %v665
    %v701 = vadd.f32 %v616, %v641
    %v702 = vadd.f32 %v617, %v645
    %v703 = vadd.f32 %v618, %v649
    %v704 = vadd.f32 %v619, %v653
    %v705 = vadd.f32 %v620, %v657
    %v706 = vadd.f32 %v621, %v661
    %v707 = vadd.f32 %v622, %v665
    %v708 = vadd.f32 %v623, %v641
    %v709 = vadd.f32 %v624, %v645
    %v710 = vadd.f32 %v625, %v649
    %v711 = vadd.f32 %v626, %v653
    %v712 = vadd.f32 %v627, %v657
    %v713 = vadd.f32 %v628, %v661
    %v714 = vadd.f32 %v629, %v665
    %v715 = vadd.f32 %v630, %v641
    %v716 = vadd.f32 %v631, %v645
    %v717 = vadd.f32 %v632, %v649
    %v718 = vadd.f32 %v633, %v653
    %v719 = vadd.f32 %v634, %v657
    %v720 = vadd.f32 %v635, %v661
    %v721 = vadd.f32 %v636, %v665
    %v722 = vld [vmem:[#allocation5] sm:$0xff]
    %v723 = vld [vmem:[#allocation5 + $0x8] sm:$0xff]
    %v724 = vld [vmem:[#allocation5 + $0x10] sm:$0xff]
    %v725 = vld [vmem:[#allocation5 + $0x18] sm:$0xff]
    %v726 = vld [vmem:[#allocation5 + $0x20] sm:$0xff]
    %v727 = vld [vmem:[#allocation5 + $0x28] sm:$0xff]
    %v728 = vld [vmem:[#allocation5 + $0x30] sm:$0xff]
    %v729 = vld [vmem:[#allocation5 + $0x38] sm:$0xff]
    %v730 = vld [vmem:[#allocation5 + $0x40] sm:$0xff]
    %v731 = vld [vmem:[#allocation5 + $0x48] sm:$0xff]
    %v732 = vld [vmem:[#allocation5 + $0x50] sm:$0xff]
    %v733 = vld [vmem:[#allocation5 + $0x58] sm:$0xff]
    %v734 = vld [vmem:[#allocation5 + $0x60] sm:$0xff]
    %v735 = vld [vmem:[#allocation5 + $0x68] sm:$0xff]
    %v736 = vld [vmem:[#allocation5 + $0x70] sm:$0xff]
    %v737 = vld [vmem:[#allocation5 + $0x78] sm:$0xff]
    %v738 = vld [vmem:[#allocation5 + $0x80] sm:$0xff]
    %v739 = vld [vmem:[#allocation5 + $0x88] sm:$0xff]
    %v740 = vld [vmem:[#allocation5 + $0x90] sm:$0xff]
    %v741 = vld [vmem:[#allocation5 + $0x98] sm:$0xff]
    %v742 = vld [vmem:[#allocation5 + $0xa0] sm:$0xff]
    %v743 = vld [vmem:[#allocation5 + $0xa8] sm:$0xff]
    %v744 = vld [vmem:[#allocation5 + $0xb0] sm:$0xff]
    %v745 = vld [vmem:[#allocation5 + $0xb8] sm:$0xff]
    %v746 = vld [vmem:[#allocation5 + $0xc0] sm:$0xff]
    %v747 = vld [vmem:[#allocation5 + $0xc8] sm:$0xff]
    %v748 = vld [vmem:[#allocation5 + $0xd0] sm:$0xff]
    %v749 = vld [vmem:[#allocation5 + $0xd8] sm:$0xff]
    %v750 = vld [vmem:[#allocation5 + $0xe0] sm:$0xff]
    %v751 = vld [vmem:[#allocation5 + $0xe8] sm:$0xff]
    %v752 = vld [vmem:[#allocation5 + $0xf0] sm:$0xff]
    %v753 = vld [vmem:[#allocation5 + $0xf8] sm:$0xff]
    %v754 = vld [vmem:[#allocation5 + $0x100] sm:$0xff]
    %v755 = vld [vmem:[#allocation5 + $0x108] sm:$0xff]
    %v756 = vld [vmem:[#allocation5 + $0x110] sm:$0xff]
    %v757 = vld [vmem:[#allocation5 + $0x118] sm:$0xff]
    %v758 = vld [vmem:[#allocation5 + $0x120] sm:$0xff]
    %v759 = vld [vmem:[#allocation5 + $0x128] sm:$0xff]
    %v760 = vld [vmem:[#allocation5 + $0x130] sm:$0xff]
    %v761 = vld [vmem:[#allocation5 + $0x138] sm:$0xff]
    %v762 = vld [vmem:[#allocation5 + $0x140] sm:$0xff]
    %v763 = vld [vmem:[#allocation5 + $0x148] sm:$0xff]
    %v764 = vld [vmem:[#allocation5 + $0x150] sm:$0x1]
    %v765 = vld [vmem:[#allocation5 + $0x158] sm:$0x1]
    %v766 = vld [vmem:[#allocation5 + $0x160] sm:$0x1]
    %v767 = vld [vmem:[#allocation5 + $0x168] sm:$0x1]
    %v768 = vld [vmem:[#allocation5 + $0x170] sm:$0x1]
    %v769 = vld [vmem:[#allocation5 + $0x178] sm:$0x1]
    %v770 = vld [vmem:[#allocation5 + $0x180] sm:$0x1]
    %v771 = vadd.f32 %v673, %v722
    %v772 = vadd.f32 %v674, %v723
    %v773 = vadd.f32 %v675, %v724
    %v774 = vadd.f32 %v676, %v725
    %v775 = vadd.f32 %v677, %v726
    %v776 = vadd.f32 %v678, %v727
    %v777 = vadd.f32 %v679, %v728
    %v778 = vadd.f32 %v680, %v729
    %v779 = vadd.f32 %v681, %v730
    %v780 = vadd.f32 %v682, %v731
    %v781 = vadd.f32 %v683, %v732
    %v782 = vadd.f32 %v684, %v733
    %v783 = vadd.f32 %v685, %v734
    %v784 = vadd.f32 %v686, %v735
    %v785 = vadd.f32 %v687, %v736
    %v786 = vadd.f32 %v688, %v737
    %v787 = vadd.f32 %v689, %v738
    %v788 = vadd.f32 %v690, %v739
    %v789 = vadd.f32 %v691, %v740
    %v790 = vadd.f32 %v692, %v741
    %v791 = vadd.f32 %v693, %v742
    %v792 = vadd.f32 %v694, %v743
    %v793 = vadd.f32 %v695, %v744
    %v794 = vadd.f32 %v696, %v745
    %v795 = vadd.f32 %v697, %v746
    %v796 = vadd.f32 %v698, %v747
    %v797 = vadd.f32 %v699, %v748
    %v798 = vadd.f32 %v700, %v749
    %v799 = vadd.f32 %v701, %v750
    %v800 = vadd.f32 %v702, %v751
    %v801 = vadd.f32 %v703, %v752
    %v802 = vadd.f32 %v704, %v753
    %v803 = vadd.f32 %v705, %v754
    %v804 = vadd.f32 %v706, %v755
    %v805 = vadd.f32 %v707, %v756
    %v806 = vadd.f32 %v708, %v757
    %v807 = vadd.f32 %v709, %v758
    %v808 = vadd.f32 %v710, %v759
    %v809 = vadd.f32 %v711, %v760
    %v810 = vadd.f32 %v712, %v761
    %v811 = vadd.f32 %v713, %v762
    %v812 = vadd.f32 %v714, %v763
    %v813 = vadd.f32 %v715, %v764
    %v814 = vadd.f32 %v716, %v765
    %v815 = vadd.f32 %v717, %v766
    %v816 = vadd.f32 %v718, %v767
    %v817 = vadd.f32 %v719, %v768
    %v818 = vadd.f32 %v720, %v769
    %v819 = vadd.f32 %v721, %v770
    %v820 = vmax.f32 %v771, 0.0
    %v821 = vmax.f32 %v772, 0.0
    %v822 = vmax.f32 %v773, 0.0
    %v823 = vmax.f32 %v774, 0.0
    %v824 = vmax.f32 %v775, 0.0
    %v825 = vmax.f32 %v776, 0.0
    %v826 = vmax.f32 %v777, 0.0
    %v827 = vmax.f32 %v778, 0.0
    %v828 = vmax.f32 %v779, 0.0
    %v829 = vmax.f32 %v780, 0.0
    %v830 = vmax.f32 %v781, 0.0
    %v831 = vmax.f32 %v782, 0.0
    %v832 = vmax.f32 %v783, 0.0
    %v833 = vmax.f32 %v784, 0.0
    %v834 = vmax.f32 %v785, 0.0
    %v835 = vmax.f32 %v786, 0.0
    %v836 = vmax.f32 %v787, 0.0
    %v837 = vmax.f32 %v788, 0.0
    %v838 = vmax.f32 %v789, 0.0
    %v839 = vmax.f32 %v790, 0.0
    %v840 = vmax.f32 %v791, 0.0
    %v841 = vmax.f32 %v792, 0.0
    %v842 = vmax.f32 %v793, 0.0
    %v843 = vmax.f32 %v794, 0.0
    %v844 = vmax.f32 %v795, 0.0
    %v845 = vmax.f32 %v796, 0.0
    %v846 = vmax.f32 %v797, 0.0
    %v847 = vmax.f32 %v798, 0.0
    %v848 = vmax.f32 %v799, 0.0
    %v849 = vmax.f32 %v800, 0.0
    %v850 = vmax.f32 %v801, 0.0
    %v851 = vmax.f32 %v802, 0.0
    %v852 = vmax.f32 %v803, 0.0
    %v853 = vmax.f32 %v804, 0.0
    %v854 = vmax.f32 %v805, 0.0
    %v855 = vmax.f32 %v806, 0.0
    %v856 = vmax.f32 %v807, 0.0
    %v857 = vmax.f32 %v808, 0.0
    %v858 = vmax.f32 %v809, 0.0
    %v859 = vmax.f32 %v810, 0.0
    %v860 = vmax.f32 %v811, 0.0
    %v861 = vmax.f32 %v812, 0.0
    %v862 = vmax.f32 %v813, 0.0
    %v863 = vmax.f32 %v814, 0.0
    %v864 = vmax.f32 %v815, 0.0
    %v865 = vmax.f32 %v816, 0.0
    %v866 = vmax.f32 %v817, 0.0
    %v867 = vmax.f32 %v818, 0.0
    %v868 = vmax.f32 %v819, 0.0
    %869 = vst [vmem:[#allocation8] sm:$0xff] %v820
    %870 = vst [vmem:[#allocation8 + $0x8] sm:$0xff] %v821
    %871 = vst [vmem:[#allocation8 + $0x10] sm:$0xff] %v822
    %872 = vst [vmem:[#allocation8 + $0x18] sm:$0xff] %v823
    %873 = vst [vmem:[#allocation8 + $0x20] sm:$0xff] %v824
    %874 = vst [vmem:[#allocation8 + $0x28] sm:$0xff] %v825
    %875 = vst.msk [vmem:[#allocation8 + $0x30] sm:$0xff] %vm185, %v826
    %876 = vst [vmem:[#allocation8 + $0x38] sm:$0xff] %v827
    %877 = vst [vmem:[#allocation8 + $0x40] sm:$0xff] %v828
    %878 = vst [vmem:[#allocation8 + $0x48] sm:$0xff] %v829
    %879 = vst [vmem:[#allocation8 + $0x50] sm:$0xff] %v830
    %880 = vst [vmem:[#allocation8 + $0x58] sm:$0xff] %v831
    %881 = vst [vmem:[#allocation8 + $0x60] sm:$0xff] %v832
    %882 = vst.msk [vmem:[#allocation8 + $0x68] sm:$0xff] %vm185, %v833
    %883 = vst [vmem:[#allocation8 + $0x70] sm:$0xff] %v834
    %884 = vst [vmem:[#allocation8 + $0x78] sm:$0xff] %v835
    %885 = vst [vmem:[#allocation8 + $0x80] sm:$0xff] %v836
    %886 = vst [vmem:[#allocation8 + $0x88] sm:$0xff] %v837
    %887 = vst [vmem:[#allocation8 + $0x90] sm:$0xff] %v838
    %888 = vst [vmem:[#allocation8 + $0x98] sm:$0xff] %v839
    %889 = vst.msk [vmem:[#allocation8 + $0xa0] sm:$0xff] %vm185, %v840
    %890 = vst [vmem:[#allocation8 + $0xa8] sm:$0xff] %v841
    %891 = vst [vmem:[#allocation8 + $0xb0] sm:$0xff] %v842
    %892 = vst [vmem:[#allocation8 + $0xb8] sm:$0xff] %v843
    %893 = vst [vmem:[#allocation8 + $0xc0] sm:$0xff] %v844
    %894 = vst [vmem:[#allocation8 + $0xc8] sm:$0xff] %v845
    %895 = vst [vmem:[#allocation8 + $0xd0] sm:$0xff] %v846
    %896 = vst.msk [vmem:[#allocation8 + $0xd8] sm:$0xff] %vm185, %v847
    %897 = vst [vmem:[#allocation8 + $0xe0] sm:$0xff] %v848
    %898 = vst [vmem:[#allocation8 + $0xe8] sm:$0xff] %v849
    %899 = vst [vmem:[#allocation8 + $0xf0] sm:$0xff] %v850
    %900 = vst [vmem:[#allocation8 + $0xf8] sm:$0xff] %v851
    %901 = vst [vmem:[#allocation8 + $0x100] sm:$0xff] %v852
    %902 = vst [vmem:[#allocation8 + $0x108] sm:$0xff] %v853
    %903 = vst.msk [vmem:[#allocation8 + $0x110] sm:$0xff] %vm185, %v854
    %904 = vst [vmem:[#allocation8 + $0x118] sm:$0xff] %v855
    %905 = vst [vmem:[#allocation8 + $0x120] sm:$0xff] %v856
    %906 = vst [vmem:[#allocation8 + $0x128] sm:$0xff] %v857
    %907 = vst [vmem:[#allocation8 + $0x130] sm:$0xff] %v858
    %908 = vst [vmem:[#allocation8 + $0x138] sm:$0xff] %v859
    %909 = vst [vmem:[#allocation8 + $0x140] sm:$0xff] %v860
    %910 = vst.msk [vmem:[#allocation8 + $0x148] sm:$0xff] %vm185, %v861
    %911 = vst [vmem:[#allocation8 + $0x150] sm:$0x1] %v862
    %912 = vst [vmem:[#allocation8 + $0x158] sm:$0x1] %v863
    %913 = vst [vmem:[#allocation8 + $0x160] sm:$0x1] %v864
    %914 = vst [vmem:[#allocation8 + $0x168] sm:$0x1] %v865
    %915 = vst [vmem:[#allocation8 + $0x170] sm:$0x1] %v866
    %916 = vst [vmem:[#allocation8 + $0x178] sm:$0x1] %v867
    %917 = vst.msk [vmem:[#allocation8 + $0x180] sm:$0x1] %vm197, %v868
    // Predicated region
    $region30: #{tpu_custom_call.1} parent=1 // pred_check
      _
    $region31: #{tpu_custom_call.1} parent=1 // pred_check_branch
      %919 = sbr.rel (0) target = $region33
    $region32: #{tpu_custom_call.1} parent=1 // pred_region
      %s921 = ssub.s32 6272, 6272
      %922 = vsyncadd [#allocation4], %s921
      %s923 = sshll.u32 [#allocation8], 4
      %s924 = int_to_ptr.vmem [resolvable:$true] %s923
      %929 = dma.vmem_to_hbm [thread:$0]  %s924, 6272, %s4, [#allocation4], 896, 896, 56
    $region33: #{tpu_custom_call.1} parent=1 // pred_fallthru
      _
    // Predicated region
    $region34: #{tpu_custom_call.1} parent=1 // pred_check
      _
    $region35: #{tpu_custom_call.1} parent=1 // pred_check_branch
      %931 = sbr.rel (0) target = $region37
    $region36: #{tpu_custom_call.1} parent=1 // pred_region
      %932 = dma.done [#allocation4], 6272
    $region37: #{tpu_custom_call.1} parent=1 // pred_fallthru
      _
    %933 = vsyncpa [#allocation3], 1
    %934 = vsyncpa [#allocation6], 1
    %935 = vsyncpa [#allocation4], 1

</llo_original>
